<compile_context>
chip_gen: v5e
topology: v5e:2x2
jax: 0.10.0
libtpu: 0.0.40
codegen_flags: <defaults>
</compile_context>

<pallas_src>
import jax
import jax.numpy as jnp
from jax.experimental import pallas as pl
from jax.experimental.pallas import tpu as pltpu

_LANE_COLS = 512                    # lane-dense last dim (multiple of 128)
_TARGET_BLOCK_BYTES = 2 * 1024 * 1024  # 2 MiB/block -> 4x resident = 8 MiB (< 16 MiB v5e scoped VMEM)
_SUBLANE_MULT = 32                  # multiple of 32: full packed tiles for bf16 / int8 / fp8 too


def _identity_kernel(x_ref, o_ref):
    # Pure pass-through copy of the VMEM tile.
    o_ref[...] = x_ref[...]


def _round_up(a: int, m: int) -> int:
    return ((a + m - 1) // m) * m


def identity(x: jax.Array) -> jax.Array:
    """Identity forward pass implemented as a Pallas TPU kernel.

    Pads the flattened input to a lane-dense 2D slab, runs a tiled copy kernel
    over a 1-D "parallel" grid with the input aliased to the output, and
    reshapes back to the original shape.
    """
    orig_shape = x.shape
    dtype = x.dtype
    itemsize = jnp.dtype(dtype).itemsize
    n = x.size
    if n == 0:
        return x

    cols = _LANE_COLS
    rows_needed = pl.cdiv(n, cols)

    # Largest sublane-tile (multiple of 32) whose block stays ~2 MiB.
    tile_rows_max = max(
        _SUBLANE_MULT,
        (_TARGET_BLOCK_BYTES // (cols * itemsize)) // _SUBLANE_MULT * _SUBLANE_MULT,
    )

    if rows_needed <= _SUBLANE_MULT:
        tile_rows = _SUBLANE_MULT                     # tiny input: single minimal block
    elif rows_needed <= tile_rows_max:
        # Aim for >= 2 grid steps so the parallel axis can shard across v7x's 2 TCs.
        tile_rows = _round_up(pl.cdiv(rows_needed, 2), _SUBLANE_MULT)
    else:
        tile_rows = tile_rows_max

    rows_padded = _round_up(rows_needed, tile_rows)
    padded_n = rows_padded * cols

    flat = x.reshape(-1)
    if padded_n != n:
        flat = jnp.pad(flat, (0, padded_n - n))
    x2d = flat.reshape(rows_padded, cols)

    grid = (rows_padded // tile_rows,)

    out2d = pl.pallas_call(
        _identity_kernel,
        out_shape=jax.ShapeDtypeStruct((rows_padded, cols), dtype),
        grid_spec=pltpu.PrefetchScalarGridSpec(
            num_scalar_prefetch=0,
            grid=grid,
            in_specs=[pl.BlockSpec((tile_rows, cols), lambda i: (i, 0))],
            out_specs=pl.BlockSpec((tile_rows, cols), lambda i: (i, 0)),
        ),
        # Write back into the (donated) input buffer: no new HBM allocation,
        # and XLA is free to elide the copy.
        input_output_aliases={0: 0},
        compiler_params=pltpu.CompilerParams(
            dimension_semantics=("parallel",),
        ),
        cost_estimate=pl.CostEstimate(
            flops=0,
            transcendentals=0,
            bytes_accessed=2 * n * itemsize,
        ),
    )(x2d)

    out_flat = out2d.reshape(-1)
    if padded_n != n:
        out_flat = out_flat[:n]
    return out_flat.reshape(orig_shape)


class Identity:
    """JAX/Pallas equivalent of the PyTorch Identity module (no parameters).

    Note: in production the forward should just `return x`; the Pallas path
    exists to demonstrate the (aliased, bandwidth-optimal) kernel form.
    """

    def __init__(self):
        pass

    def __call__(self, x):
        return identity(x)


if __name__ == "__main__":
    key = jax.random.PRNGKey(0)
    # Small NCHW input consistent with a mobilenet feature map.
    x = jax.random.normal(key, (2, 4, 16, 16), dtype=jnp.float32)

    model = Identity()
    y = model(x)
    jax.block_until_ready(y)

    assert y.shape == x.shape and y.dtype == x.dtype
    assert bool(jnp.all(y == x))
    print("KERNEL_OK")
</pallas_src>

<mosaic_0001>
module attributes {stable_mosaic.version = 11 : i64} {
  func.func @_identity_kernel(%arg0: i32, %arg1: memref<32x512xf32, #tpu.memory_space<vmem>>, %arg2: memref<32x512xf32, #tpu.memory_space<vmem>>) attributes {dimension_semantics = [#tpu.dimension_semantics<parallel>], iteration_bounds = array<i64: 1>, scalar_prefetch = 0 : i64, scratch_operands = 0 : i64, tpu.core_type = #tpu.core_type<tc>, window_params = [{transform_indices = @transform_0, window_bounds = array<i64: 32, 512>}, {transform_indices = @transform_1, window_bounds = array<i64: 32, 512>}]} {
    %c0 = arith.constant 0 : index
    %c0_0 = arith.constant 0 : index
    %0 = vector.load %arg1[%c0, %c0_0] : memref<32x512xf32, #tpu.memory_space<vmem>>, vector<32x512xf32>
    %c0_1 = arith.constant 0 : index
    %c0_2 = arith.constant 0 : index
    %1 = vector.load %arg2[%c0_1, %c0_2] : memref<32x512xf32, #tpu.memory_space<vmem>>, vector<32x512xf32>
    tpu.vector_store %arg2[%c0_1, %c0_2], %0 {strides = array<i32>} : memref<32x512xf32, #tpu.memory_space<vmem>>, vector<32x512xf32>,
    return
  }
  func.func @transform_0(%arg0: i32) -> (i32, i32) {
    %c0_i32 = arith.constant 0 : i32
    %c0_i32_0 = arith.constant 0 : i32
    return %arg0, %c0_i32 : i32, i32
  }
  func.func @transform_1(%arg0: i32) -> (i32, i32) {
    %c0_i32 = arith.constant 0 : i32
    %c0_i32_0 = arith.constant 0 : i32
    return %arg0, %c0_i32 : i32, i32
  }
}

</mosaic_0001>

<llo_original>
// kernel: tpu_custom_call.1
$region0: #{tpu_custom_call.1}
  #allocation0 [shape = 'u32[]', space=smem, size = 0x4, offset = 0x4, fixed_abs, tag = 'smem constant byte address 0x4 - core index']
  #allocation1 [shape = 'u32[72,128]{1,0:T(1,128)}', space=vmem, size = 0x9000, scoped, tag = 'internal scratch']
  %s0 = inlined_call_operand.hbm [shape: f32[32,512], index: 0, kind: input, shape index: {}, may-alias: {0,1}]
  %s1 = inlined_call_operand.hbm [shape: f32[32,512], index: 1, kind: output, shape index: {}, may-alias: {0,1}]
  %s2 = sld [smem:[#allocation0]]
  $region18: #{tpu_custom_call.1} parent=0
    _
  %s4 = ssub.s32 1, %s2
  %s5 = scalar_select 0, %s4, %s2
  $region1: #{tpu_custom_call.1} parent=0
    #allocation2 [shape = 'u8[65536]{0}', space=vmem, size = 0x10000, scoped, tag = 'input window, operand 0, single buffered']
    #allocation3 [shape = 's32[1]{0}', space=sflag, size = 0x4, scoped, tag = 'scoped memory for tpu_custom_call.1']
    #allocation4 [shape = 's32[1]{0}', space=sflag, size = 0x4, scoped, tag = 'scoped memory for tpu_custom_call.1']
    #allocation5 [shape = 'u8[65536]{0}', space=vmem, size = 0x10000, scoped, tag = 'output window, operand 0, single buffered']
    %6 = vsyncpa [#allocation3], 0
    %7 = vsyncpa [#allocation4], 0
    // Predicated region
    $region2: #{tpu_custom_call.1} parent=1 // pred_check
      _
    $region3: #{tpu_custom_call.1} parent=1 // pred_check_branch
      %9 = sbr.rel (0) target = $region5
    $region4: #{tpu_custom_call.1} parent=1 // pred_region
      %11 = vsyncadd [#allocation3], 0
      %s12 = sshll.u32 %s0, 4
      %s13 = int_to_ptr.hbm [resolvable:$true] %s12
      %s14 = sshll.u32 [#allocation2], 4
      %s15 = int_to_ptr.vmem [resolvable:$true] %s14
      %20 = dma.hbm_to_vmem [thread:$0]  %s13, 2048, %s15, [#allocation3], 512, 512, 32
    $region5: #{tpu_custom_call.1} parent=1 // pred_fallthru
      _
    // Predicated region
    $region6: #{tpu_custom_call.1} parent=1 // pred_check
      _
    $region7: #{tpu_custom_call.1} parent=1 // pred_check_branch
      %22 = sbr.rel (0) target = $region9
    $region8: #{tpu_custom_call.1} parent=1 // pred_region
      %24 = dma.done [#allocation3], 2048
    $region9: #{tpu_custom_call.1} parent=1 // pred_fallthru
      _
    %v25 = vld [vmem:[#allocation2] sm:$0xff]
    %v26 = vld [vmem:[#allocation2 + $0x8] sm:$0xff]
    %v27 = vld [vmem:[#allocation2 + $0x10] sm:$0xff]
    %v28 = vld [vmem:[#allocation2 + $0x18] sm:$0xff]
    %v29 = vld [vmem:[#allocation2 + $0x20] sm:$0xff]
    %v30 = vld [vmem:[#allocation2 + $0x28] sm:$0xff]
    %v31 = vld [vmem:[#allocation2 + $0x30] sm:$0xff]
    %v32 = vld [vmem:[#allocation2 + $0x38] sm:$0xff]
    %v33 = vld [vmem:[#allocation2 + $0x40] sm:$0xff]
    %v34 = vld [vmem:[#allocation2 + $0x48] sm:$0xff]
    %v35 = vld [vmem:[#allocation2 + $0x50] sm:$0xff]
    %v36 = vld [vmem:[#allocation2 + $0x58] sm:$0xff]
    %v37 = vld [vmem:[#allocation2 + $0x60] sm:$0xff]
    %v38 = vld [vmem:[#allocation2 + $0x68] sm:$0xff]
    %v39 = vld [vmem:[#allocation2 + $0x70] sm:$0xff]
    %v40 = vld [vmem:[#allocation2 + $0x78] sm:$0xff]
    %41 = vst [vmem:[#allocation5] sm:$0xff] %v25
    %42 = vst [vmem:[#allocation5 + $0x8] sm:$0xff] %v26
    %43 = vst [vmem:[#allocation5 + $0x10] sm:$0xff] %v27
    %44 = vst [vmem:[#allocation5 + $0x18] sm:$0xff] %v28
    %45 = vst [vmem:[#allocation5 + $0x20] sm:$0xff] %v29
    %46 = vst [vmem:[#allocation5 + $0x28] sm:$0xff] %v30
    %47 = vst [vmem:[#allocation5 + $0x30] sm:$0xff] %v31
    %48 = vst [vmem:[#allocation5 + $0x38] sm:$0xff] %v32
    %49 = vst [vmem:[#allocation5 + $0x40] sm:$0xff] %v33
    %50 = vst [vmem:[#allocation5 + $0x48] sm:$0xff] %v34
    %51 = vst [vmem:[#allocation5 + $0x50] sm:$0xff] %v35
    %52 = vst [vmem:[#allocation5 + $0x58] sm:$0xff] %v36
    %53 = vst [vmem:[#allocation5 + $0x60] sm:$0xff] %v37
    %54 = vst [vmem:[#allocation5 + $0x68] sm:$0xff] %v38
    %55 = vst [vmem:[#allocation5 + $0x70] sm:$0xff] %v39
    %56 = vst [vmem:[#allocation5 + $0x78] sm:$0xff] %v40
    // Predicated region
    $region10: #{tpu_custom_call.1} parent=1 // pred_check
      _
    $region11: #{tpu_custom_call.1} parent=1 // pred_check_branch
      %58 = sbr.rel (0) target = $region13
    $region12: #{tpu_custom_call.1} parent=1 // pred_region
      %60 = vsyncadd [#allocation4], 0
      %s61 = sshll.u32 [#allocation5], 4
      %s62 = int_to_ptr.vmem [resolvable:$true] %s61
      %s63 = sshll.u32 %s1, 4
      %s64 = int_to_ptr.hbm [resolvable:$true] %s63
      %69 = dma.vmem_to_hbm [thread:$0]  %s62, 2048, %s64, [#allocation4], 512, 512, 32
    $region13: #{tpu_custom_call.1} parent=1 // pred_fallthru
      _
    // Predicated region
    $region14: #{tpu_custom_call.1} parent=1 // pred_check
      _
    $region15: #{tpu_custom_call.1} parent=1 // pred_check_branch
      %71 = sbr.rel (0) target = $region17
    $region16: #{tpu_custom_call.1} parent=1 // pred_region
      %73 = dma.done [#allocation4], 2048
    $region17: #{tpu_custom_call.1} parent=1 // pred_fallthru
      _
    %74 = vsyncpa [#allocation3], 1
    %75 = vsyncpa [#allocation4], 1

</llo_original>
